<compile_context>
chip_gen: v7x
topology: tpu7x:2x2x1
jax: 0.10.0
libtpu: 0.0.40
codegen_flags: <defaults>
</compile_context>

<pallas_src>
import jax
import jax.numpy as jnp
from jax.experimental import pallas as pl
from jax.experimental.pallas import tpu as pltpu

LOG_SIG_MAX = 2.0
LOG_SIG_MIN = -20.0


def _round_up(x, m):
    return ((x + m - 1) // m) * m


def gaussian_policy_kernel(state_ref,
                           w1_ref, b1_ref,
                           w2_ref, b2_ref,
                           wh_ref, bh_ref,
                           lo_ref, hi_ref,
                           out_ref):
    # hidden layer 1: relu(state @ W1 + b1).  Kept in f32: K = d_obs is tiny,
    # so the MXU cost is negligible and numerics match the f32 torch module.
    x = jnp.dot(state_ref[...], w1_ref[...], preferred_element_type=jnp.float32)
    x = jnp.maximum(x + b1_ref[...], 0.0)

    # hidden layer 2: relu(x @ W2 + b2)  (bf16 MXU inputs, f32 accumulate)
    x = jnp.dot(x.astype(jnp.bfloat16), w2_ref[...],
                preferred_element_type=jnp.float32)
    x = jnp.maximum(x + b2_ref[...], 0.0)

    # fused heads: [mean | log_std | zero-pad] in one lane-dense matmul + store
    head = jnp.dot(x.astype(jnp.bfloat16), wh_ref[...],
                   preferred_element_type=jnp.float32) + bh_ref[...]

    # per-lane clamp vectors: (-inf, +inf) on mean lanes (identity),
    # (LOG_SIG_MIN, LOG_SIG_MAX) on log_std lanes, (0, 0) on pad lanes.
    out_ref[...] = jnp.minimum(jnp.maximum(head, lo_ref[...]),
                               hi_ref[...]).astype(out_ref.dtype)


def prepare_params(params):
    """Fuse the two heads, zero-pad to a 128-lane slab, build per-lane clamp
    vectors, cast the big weights to bf16.  Call once; the result is what
    gaussian_policy_forward consumes."""
    d_act = params["wm"].shape[1]
    hidden = params["wm"].shape[0]
    head_pad = max(128, _round_up(2 * d_act, 128))

    wh = jnp.zeros((hidden, head_pad), jnp.float32)
    wh = wh.at[:, :d_act].set(params["wm"]).at[:, d_act:2 * d_act].set(params["ws"])
    bh = jnp.zeros((1, head_pad), jnp.float32)
    bh = bh.at[:, :d_act].set(params["bm"]).at[:, d_act:2 * d_act].set(params["bs"])

    lo = jnp.full((1, head_pad), -jnp.inf, jnp.float32)
    lo = lo.at[:, d_act:2 * d_act].set(LOG_SIG_MIN).at[:, 2 * d_act:].set(0.0)
    hi = jnp.full((1, head_pad), jnp.inf, jnp.float32)
    hi = hi.at[:, d_act:2 * d_act].set(LOG_SIG_MAX).at[:, 2 * d_act:].set(0.0)

    return {
        "w1": params["w1"].astype(jnp.float32),   # f32 first layer (tiny K)
        "b1": params["b1"].astype(jnp.float32),
        "w2": params["w2"].astype(jnp.bfloat16),
        "b2": params["b2"].astype(jnp.float32),
        "wh": wh.astype(jnp.bfloat16),
        "bh": bh,
        "lo": lo,
        "hi": hi,
        "d_act": d_act,
    }


def gaussian_policy_forward(state, prepped, *, block_b=4096, out_dtype=jnp.float32):
    """state: [B, d_obs] f32; prepped: output of prepare_params."""
    B, d_obs = state.shape
    hidden = prepped["w1"].shape[1]
    head_pad = prepped["wh"].shape[1]
    d_act = prepped["d_act"]
    out_itemsize = jnp.dtype(out_dtype).itemsize

    weight_bytes = sum(int(prepped[k].size) * jnp.dtype(prepped[k].dtype).itemsize
                       for k in ("w1", "b1", "w2", "b2", "wh", "bh", "lo", "hi"))

    # Large resident weights: single-buffer them (they use a constant index_map,
    # so double-buffering only wastes VMEM).  Small weights: leave the default.
    big_weights = weight_bytes > (4 << 20)
    w_buf_factor = 1 if big_weights else 2

    def footprint(bt_):
        io = 2 * bt_ * d_obs * 4 + 2 * bt_ * head_pad * out_itemsize  # dbl-buffered tiles
        interm = 2 * bt_ * hidden * 4                                 # live f32 activations
        return io + weight_bytes * w_buf_factor + interm

    # Batch tile: multiple of 16, at least 2 grid steps for large B (v7x megacore),
    # shrunk if needed to fit the VMEM budget (safe for v7x's 64 MiB VMEM).
    budget = 40 << 20
    bt = min(_round_up(block_b, 16), max(16, _round_up(-(-B // 2), 16)))
    while bt > 16 and footprint(bt) > budget:
        bt = max(16, _round_up(bt // 2, 16))

    grid = (pl.cdiv(B, bt),)        # partial last block: reads padded, writes masked
    const = lambda i: (0, 0)        # weights/biases/clamp vectors stay VMEM-resident

    if big_weights:
        cspec = lambda shape: pl.BlockSpec(shape, const, pipeline_mode=pl.Buffered(1))
    else:
        cspec = lambda shape: pl.BlockSpec(shape, const)

    flops = 2 * B * (d_obs * hidden + hidden * hidden + hidden * head_pad)
    bytes_accessed = (B * d_obs * 4 + weight_bytes + B * head_pad * out_itemsize)
    vmem_limit = int(min(max(footprint(bt) + (4 << 20), 32 << 20), 56 << 20))

    out = pl.pallas_call(
        gaussian_policy_kernel,
        out_shape=jax.ShapeDtypeStruct((B, head_pad), out_dtype),
        grid=grid,
        in_specs=[
            pl.BlockSpec((bt, d_obs), lambda i: (i, 0)),
            cspec((d_obs, hidden)),
            cspec((1, hidden)),
            cspec((hidden, hidden)),
            cspec((1, hidden)),
            cspec((hidden, head_pad)),
            cspec((1, head_pad)),
            cspec((1, head_pad)),
            cspec((1, head_pad)),
        ],
        out_specs=pl.BlockSpec((bt, head_pad), lambda i: (i, 0)),
        compiler_params=pltpu.CompilerParams(
            dimension_semantics=("parallel",),
            vmem_limit_bytes=vmem_limit),
        cost_estimate=pl.CostEstimate(
            flops=int(flops), transcendentals=0,
            bytes_accessed=int(bytes_accessed)),
    )(state,
      prepped["w1"], prepped["b1"],
      prepped["w2"], prepped["b2"],
      prepped["wh"], prepped["bh"],
      prepped["lo"], prepped["hi"])

    mean = out[:, :d_act].astype(jnp.float32)
    log_std = out[:, d_act:2 * d_act].astype(jnp.float32)
    return mean, log_std


def xavier_uniform(key, fan_in, fan_out, gain=1.0):
    # Matches torch.nn.init.xavier_uniform_ semantics.
    limit = gain * jnp.sqrt(6.0 / (fan_in + fan_out))
    return jax.random.uniform(key, (fan_in, fan_out), jnp.float32,
                              minval=-limit, maxval=limit)


def init_params(key, d_obs, d_act, hidden_dim):
    k1, k2, k3, k4 = jax.random.split(key, 4)
    # Weights stored [in, out] so kernel does x @ W + b (== nn.Linear).
    return {
        "w1": xavier_uniform(k1, d_obs, hidden_dim),
        "b1": jnp.zeros((1, hidden_dim), jnp.float32),
        "w2": xavier_uniform(k2, hidden_dim, hidden_dim),
        "b2": jnp.zeros((1, hidden_dim), jnp.float32),
        "wm": xavier_uniform(k3, hidden_dim, d_act),
        "bm": jnp.zeros((1, d_act), jnp.float32),
        "ws": xavier_uniform(k4, hidden_dim, d_act),
        "bs": jnp.zeros((1, d_act), jnp.float32),
    }


if __name__ == "__main__":
    key = jax.random.PRNGKey(0)
    k_param, k_state, k_state2 = jax.random.split(key, 3)

    B, d_obs, d_act, hidden_dim = 8, 16, 4, 32
    params = init_params(k_param, d_obs, d_act, hidden_dim)
    prepped = prepare_params(params)
    state = jax.random.normal(k_state, (B, d_obs), jnp.float32)

    mean, log_std = gaussian_policy_forward(state, prepped)
    jax.block_until_ready((mean, log_std))

    # Reference 1: same numeric path as the kernel (layer-1 f32, bf16 MXU
    # inputs / f32 accumulation for layer-2 and the heads).
    def ref_kernel_math(s, p):
        x = jnp.maximum(jnp.dot(s, p["w1"], preferred_element_type=jnp.float32)
                        + p["b1"], 0.0)
        x = jnp.dot(x.astype(jnp.bfloat16), p["w2"].astype(jnp.bfloat16),
                    preferred_element_type=jnp.float32)
        x = jnp.maximum(x + p["b2"], 0.0)
        xb = x.astype(jnp.bfloat16)
        m = jnp.dot(xb, p["wm"].astype(jnp.bfloat16),
                    preferred_element_type=jnp.float32) + p["bm"]
        ls = jnp.dot(xb, p["ws"].astype(jnp.bfloat16),
                     preferred_element_type=jnp.float32) + p["bs"]
        return m, jnp.clip(ls, LOG_SIG_MIN, LOG_SIG_MAX)

    # Reference 2: original full-f32 math (loose, bf16 rounding tolerance).
    def ref_f32(s, p):
        x = jnp.maximum(s @ p["w1"] + p["b1"], 0.0)
        x = jnp.maximum(x @ p["w2"] + p["b2"], 0.0)
        m = x @ p["wm"] + p["bm"]
        ls = jnp.clip(x @ p["ws"] + p["bs"], LOG_SIG_MIN, LOG_SIG_MAX)
        return m, ls

    m_t, ls_t = ref_kernel_math(state, params)
    m_f, ls_f = ref_f32(state, params)

    assert mean.shape == (B, d_act) and log_std.shape == (B, d_act)
    assert mean.dtype == jnp.float32 and log_std.dtype == jnp.float32
    assert jnp.allclose(mean, m_t, atol=1e-2, rtol=1e-2), "mean mismatch (kernel-math ref)"
    assert jnp.allclose(log_std, ls_t, atol=1e-2, rtol=1e-2), "log_std mismatch (kernel-math ref)"
    assert jnp.allclose(mean, m_f, atol=5e-2, rtol=5e-2), "mean mismatch (f32 ref)"
    assert jnp.allclose(log_std, ls_f, atol=5e-2, rtol=5e-2), "log_std mismatch (f32 ref)"

    # Multi-step grid + partial last block (B not a multiple of the tile).
    B2 = 50
    state2 = jax.random.normal(k_state2, (B2, d_obs), jnp.float32)
    mean2, log_std2 = gaussian_policy_forward(state2, prepped, block_b=16)
    jax.block_until_ready((mean2, log_std2))
    m2_t, ls2_t = ref_kernel_math(state2, params)
    m2_f, ls2_f = ref_f32(state2, params)
    assert mean2.shape == (B2, d_act) and log_std2.shape == (B2, d_act)
    assert jnp.allclose(mean2, m2_t, atol=1e-2, rtol=1e-2), "mean mismatch (partial block)"
    assert jnp.allclose(log_std2, ls2_t, atol=1e-2, rtol=1e-2), "log_std mismatch (partial block)"
    assert jnp.allclose(mean2, m2_f, atol=5e-2, rtol=5e-2)
    assert jnp.allclose(log_std2, ls2_f, atol=5e-2, rtol=5e-2)

    # Optional bf16 output slab (halves the head-slab HBM writeback at large B).
    mean_b, log_std_b = gaussian_policy_forward(state, prepped, out_dtype=jnp.bfloat16)
    jax.block_until_ready((mean_b, log_std_b))
    assert jnp.allclose(mean_b, mean, atol=3e-2, rtol=3e-2), "mean mismatch (bf16 out)"
    assert jnp.allclose(log_std_b, log_std, atol=3e-2, rtol=3e-2), "log_std mismatch (bf16 out)"

    print("KERNEL_OK")
</pallas_src>

<mosaic_0001>
module attributes {stable_mosaic.version = 11 : i64} {
  func.func @gaussian_policy_kernel(%arg0: i32, %arg1: memref<16x16xf32, #tpu.memory_space<vmem>>, %arg2: memref<16x32xf32, #tpu.memory_space<vmem>>, %arg3: memref<1x32xf32, #tpu.memory_space<vmem>>, %arg4: memref<32x32xbf16, #tpu.memory_space<vmem>>, %arg5: memref<1x32xf32, #tpu.memory_space<vmem>>, %arg6: memref<32x128xbf16, #tpu.memory_space<vmem>>, %arg7: memref<1x128xf32, #tpu.memory_space<vmem>>, %arg8: memref<1x128xf32, #tpu.memory_space<vmem>>, %arg9: memref<1x128xf32, #tpu.memory_space<vmem>>, %arg10: memref<16x128xf32, #tpu.memory_space<vmem>>) attributes {dimension_semantics = [#tpu.dimension_semantics<parallel>], iteration_bounds = array<i64: 1>, scalar_prefetch = 0 : i64, scratch_operands = 0 : i64, tpu.core_type = #tpu.core_type<tc>, window_params = [{transform_indices = @transform_0, window_bounds = array<i64: 16, 16>}, {pipeline_mode = #tpu.pipeline_mode<synchronous>, transform_indices = @transform_1, window_bounds = array<i64: 16, 32>}, {pipeline_mode = #tpu.pipeline_mode<synchronous>, transform_indices = @transform_2, window_bounds = array<i64: 1, 32>}, {pipeline_mode = #tpu.pipeline_mode<synchronous>, transform_indices = @transform_3, window_bounds = array<i64: 32, 32>}, {pipeline_mode = #tpu.pipeline_mode<synchronous>, transform_indices = @transform_4, window_bounds = array<i64: 1, 32>}, {pipeline_mode = #tpu.pipeline_mode<synchronous>, transform_indices = @transform_5, window_bounds = array<i64: 32, 128>}, {pipeline_mode = #tpu.pipeline_mode<synchronous>, transform_indices = @transform_6, window_bounds = array<i64: 1, 128>}, {pipeline_mode = #tpu.pipeline_mode<synchronous>, transform_indices = @transform_7, window_bounds = array<i64: 1, 128>}, {pipeline_mode = #tpu.pipeline_mode<synchronous>, transform_indices = @transform_8, window_bounds = array<i64: 1, 128>}, {transform_indices = @transform_9, window_bounds = array<i64: 16, 128>}]} {
    %c0 = arith.constant 0 : index
    %c0_0 = arith.constant 0 : index
    %0 = vector.load %arg1[%c0, %c0_0] : memref<16x16xf32, #tpu.memory_space<vmem>>, vector<16x16xf32>
    %c0_1 = arith.constant 0 : index
    %c0_2 = arith.constant 0 : index
    %1 = vector.load %arg2[%c0_1, %c0_2] : memref<16x32xf32, #tpu.memory_space<vmem>>, vector<16x32xf32>
    %cst = arith.constant dense<0.000000e+00> : vector<16x32xf32>
    %2 = tpu.matmul %0, %1, %cst {dimension_numbers = #tpu.dot_dimension_numbers<[1], [0], [0], [1], [0, 0, 1, 1], [], []>} : vector<16x16xf32>, vector<16x32xf32>, vector<16x32xf32> -> vector<16x32xf32>
    %c0_3 = arith.constant 0 : index
    %c0_4 = arith.constant 0 : index
    %3 = vector.load %arg3[%c0_3, %c0_4] : memref<1x32xf32, #tpu.memory_space<vmem>>, vector<1x32xf32>
    %4 = vector.broadcast %3 : vector<1x32xf32> to vector<16x32xf32>
    %5 = arith.addf %2, %4 : vector<16x32xf32>
    %cst_5 = arith.constant 0.000000e+00 : f32
    %6 = vector.broadcast %cst_5 : f32 to vector<16x32xf32>
    %7 = arith.maximumf %5, %6 : vector<16x32xf32>
    %8 = arith.truncf %7 : vector<16x32xf32> to vector<16x32xbf16>
    %c0_6 = arith.constant 0 : index
    %c0_7 = arith.constant 0 : index
    %9 = vector.load %arg4[%c0_6, %c0_7] : memref<32x32xbf16, #tpu.memory_space<vmem>>, vector<32x32xbf16>
    %cst_8 = arith.constant dense<0.000000e+00> : vector<16x32xf32>
    %10 = tpu.matmul %8, %9, %cst_8 {dimension_numbers = #tpu.dot_dimension_numbers<[1], [0], [0], [1], [0, 0, 1, 1], [], []>} : vector<16x32xbf16>, vector<32x32xbf16>, vector<16x32xf32> -> vector<16x32xf32>
    %c0_9 = arith.constant 0 : index
    %c0_10 = arith.constant 0 : index
    %11 = vector.load %arg5[%c0_9, %c0_10] : memref<1x32xf32, #tpu.memory_space<vmem>>, vector<1x32xf32>
    %12 = vector.broadcast %11 : vector<1x32xf32> to vector<16x32xf32>
    %13 = arith.addf %10, %12 : vector<16x32xf32>
    %cst_11 = arith.constant 0.000000e+00 : f32
    %14 = vector.broadcast %cst_11 : f32 to vector<16x32xf32>
    %15 = arith.maximumf %13, %14 : vector<16x32xf32>
    %16 = arith.truncf %15 : vector<16x32xf32> to vector<16x32xbf16>
    %c0_12 = arith.constant 0 : index
    %c0_13 = arith.constant 0 : index
    %17 = vector.load %arg6[%c0_12, %c0_13] : memref<32x128xbf16, #tpu.memory_space<vmem>>, vector<32x128xbf16>
    %cst_14 = arith.constant dense<0.000000e+00> : vector<16x128xf32>
    %18 = tpu.matmul %16, %17, %cst_14 {dimension_numbers = #tpu.dot_dimension_numbers<[1], [0], [0], [1], [0, 0, 1, 1], [], []>} : vector<16x32xbf16>, vector<32x128xbf16>, vector<16x128xf32> -> vector<16x128xf32>
    %c0_15 = arith.constant 0 : index
    %c0_16 = arith.constant 0 : index
    %19 = vector.load %arg7[%c0_15, %c0_16] : memref<1x128xf32, #tpu.memory_space<vmem>>, vector<1x128xf32>
    %20 = vector.broadcast %19 : vector<1x128xf32> to vector<16x128xf32>
    %21 = arith.addf %18, %20 : vector<16x128xf32>
    %c0_17 = arith.constant 0 : index
    %c0_18 = arith.constant 0 : index
    %22 = vector.load %arg8[%c0_17, %c0_18] : memref<1x128xf32, #tpu.memory_space<vmem>>, vector<1x128xf32>
    %23 = vector.broadcast %22 : vector<1x128xf32> to vector<16x128xf32>
    %24 = arith.maximumf %21, %23 : vector<16x128xf32>
    %c0_19 = arith.constant 0 : index
    %c0_20 = arith.constant 0 : index
    %25 = vector.load %arg9[%c0_19, %c0_20] : memref<1x128xf32, #tpu.memory_space<vmem>>, vector<1x128xf32>
    %26 = vector.broadcast %25 : vector<1x128xf32> to vector<16x128xf32>
    %27 = arith.minimumf %24, %26 : vector<16x128xf32>
    %c0_21 = arith.constant 0 : index
    %c0_22 = arith.constant 0 : index
    %28 = vector.load %arg10[%c0_21, %c0_22] : memref<16x128xf32, #tpu.memory_space<vmem>>, vector<16x128xf32>
    tpu.vector_store %arg10[%c0_21, %c0_22], %27 {strides = array<i32>} : memref<16x128xf32, #tpu.memory_space<vmem>>, vector<16x128xf32>,
    return
  }
  func.func @transform_0(%arg0: i32) -> (i32, i32) {
    %c0_i32 = arith.constant 0 : i32
    %c0_i32_0 = arith.constant 0 : i32
    return %arg0, %c0_i32 : i32, i32
  }
  func.func @transform_1(%arg0: i32) -> (i32, i32) {
    %c0_i32 = arith.constant 0 : i32
    %c0_i32_0 = arith.constant 0 : i32
    %c0_i32_1 = arith.constant 0 : i32
    return %c0_i32, %c0_i32_0 : i32, i32
  }
  func.func @transform_2(%arg0: i32) -> (i32, i32) {
    %c0_i32 = arith.constant 0 : i32
    %c0_i32_0 = arith.constant 0 : i32
    %c0_i32_1 = arith.constant 0 : i32
    return %c0_i32, %c0_i32_0 : i32, i32
  }
  func.func @transform_3(%arg0: i32) -> (i32, i32) {
    %c0_i32 = arith.constant 0 : i32
    %c0_i32_0 = arith.constant 0 : i32
    %c0_i32_1 = arith.constant 0 : i32
    return %c0_i32, %c0_i32_0 : i32, i32
  }
  func.func @transform_4(%arg0: i32) -> (i32, i32) {
    %c0_i32 = arith.constant 0 : i32
    %c0_i32_0 = arith.constant 0 : i32
    %c0_i32_1 = arith.constant 0 : i32
    return %c0_i32, %c0_i32_0 : i32, i32
  }
  func.func @transform_5(%arg0: i32) -> (i32, i32) {
    %c0_i32 = arith.constant 0 : i32
    %c0_i32_0 = arith.constant 0 : i32
    %c0_i32_1 = arith.constant 0 : i32
    return %c0_i32, %c0_i32_0 : i32, i32
  }
  func.func @transform_6(%arg0: i32) -> (i32, i32) {
    %c0_i32 = arith.constant 0 : i32
    %c0_i32_0 = arith.constant 0 : i32
    %c0_i32_1 = arith.constant 0 : i32
    return %c0_i32, %c0_i32_0 : i32, i32
  }
  func.func @transform_7(%arg0: i32) -> (i32, i32) {
    %c0_i32 = arith.constant 0 : i32
    %c0_i32_0 = arith.constant 0 : i32
    %c0_i32_1 = arith.constant 0 : i32
    return %c0_i32, %c0_i32_0 : i32, i32
  }
  func.func @transform_8(%arg0: i32) -> (i32, i32) {
    %c0_i32 = arith.constant 0 : i32
    %c0_i32_0 = arith.constant 0 : i32
    %c0_i32_1 = arith.constant 0 : i32
    return %c0_i32, %c0_i32_0 : i32, i32
  }
  func.func @transform_9(%arg0: i32) -> (i32, i32) {
    %c0_i32 = arith.constant 0 : i32
    %c0_i32_0 = arith.constant 0 : i32
    return %arg0, %c0_i32 : i32, i32
  }
}

</mosaic_0001>

<llo_original>
// kernel: tpu_custom_call.1
$region0: #{tpu_custom_call.1}
  #allocation0 [shape = 'u32[]', space=smem, size = 0x4, offset = 0x4, fixed_abs, tag = 'smem constant byte address 0x4 - core index']
  #allocation1 [shape = 'u32[144,128]{1,0:T(1,128)}', space=vmem, size = 0x12000, scoped, tag = 'internal scratch']
  %s0 = inlined_call_operand.hbm [shape: f32[8,16], index: 0, kind: input, shape index: {}]
  %s1 = inlined_call_operand.hbm [shape: f32[16,32], index: 1, kind: input, shape index: {}]
  %s2 = inlined_call_operand.vmem [shape: f32[1,32], index: 2, kind: input, shape index: {}]
  %s3 = inlined_call_operand.hbm [shape: bf16[32,32], index: 3, kind: input, shape index: {}]
  %s4 = inlined_call_operand.vmem [shape: f32[1,32], index: 4, kind: input, shape index: {}]
  %s5 = inlined_call_operand.vmem [shape: bf16[32,128], index: 5, kind: input, shape index: {}]
  %s6 = inlined_call_operand.vmem [shape: f32[1,128], index: 6, kind: input, shape index: {}]
  %s7 = inlined_call_operand.vmem [shape: f32[1,128], index: 7, kind: input, shape index: {}]
  %s8 = inlined_call_operand.vmem [shape: f32[1,128], index: 8, kind: input, shape index: {}]
  %s9 = inlined_call_operand.hbm [shape: f32[8,128], index: 9, kind: output, shape index: {}]
  %s10 = sld [smem:[#allocation0]]
  $region58: #{tpu_custom_call.1} parent=0
    _
  %s12 = ssub.s32 1, %s10
  %s13 = scalar_select 0, %s12, %s10
  $region1: #{tpu_custom_call.1} parent=0
    #allocation2 [shape = 'u8[8192]{0}', space=vmem, size = 0x2000, scoped, tag = 'input window, operand 0, single buffered']
    #allocation3 [shape = 's32[1]{0}', space=sflag, size = 0x4, scoped, tag = 'scoped memory for tpu_custom_call.1']
    #allocation4 [shape = 's32[1]{0}', space=sflag, size = 0x4, scoped, tag = 'scoped memory for tpu_custom_call.1']
    #allocation5 [shape = 'u8[8192]{0}', space=vmem, size = 0x2000, scoped, tag = 'input window, operand 1, single buffered']
    #allocation6 [shape = 's32[1]{0}', space=sflag, size = 0x4, scoped, tag = 'scoped memory for tpu_custom_call.1']
    #allocation7 [shape = 'u8[8192]{0}', space=vmem, size = 0x2000, scoped, tag = 'input window, operand 3, single buffered']
    #allocation8 [shape = 'u8[8192]{0}', space=vmem, size = 0x2000, scoped, tag = 'output window, operand 0, single buffered']
    %14 = vsyncpa [#allocation3], 0
    %15 = vsyncpa [#allocation6], 0
    %16 = vsyncpa [#allocation4], 0
    // Predicated region
    $region2: #{tpu_custom_call.1} parent=1 // pred_check
      _
    $region3: #{tpu_custom_call.1} parent=1 // pred_check_branch
      %18 = sbr.rel (0) target = $region5
    $region4: #{tpu_custom_call.1} parent=1 // pred_region
      %s20 = ssub.s32 256, 128
      %21 = vsyncadd [#allocation3], %s20
      %s22 = sshll.u32 [#allocation2], 4
      %s23 = int_to_ptr.vmem [resolvable:$true] %s22
      %28 = dma.hbm_to_vmem [thread:$0]  %s0, 128, %s23, [#allocation3], 128, 128, 8
    $region5: #{tpu_custom_call.1} parent=1 // pred_fallthru
      _
    // Predicated region
    $region6: #{tpu_custom_call.1} parent=1 // pred_check
      _
    $region7: #{tpu_custom_call.1} parent=1 // pred_check_branch
      %30 = sbr.rel (0) target = $region9
    $region8: #{tpu_custom_call.1} parent=1 // pred_region
      %s32 = ssub.s32 256, 256
      %33 = vsyncadd [#allocation6], %s32
      %s34 = sshll.u32 [#allocation5], 4
      %s35 = int_to_ptr.vmem [resolvable:$true] %s34
      %40 = dma.hbm_to_vmem [thread:$0]  %s1, 256, %s35, [#allocation6], 128, 128, 8
    $region9: #{tpu_custom_call.1} parent=1 // pred_fallthru
      _
    // Predicated region
    $region10: #{tpu_custom_call.1} parent=1 // pred_check
      _
    $region11: #{tpu_custom_call.1} parent=1 // pred_check_branch
      %42 = sbr.rel (0) target = $region13
    $region12: #{tpu_custom_call.1} parent=1 // pred_region
      _
    $region13: #{tpu_custom_call.1} parent=1 // pred_fallthru
      _
    // Predicated region
    $region14: #{tpu_custom_call.1} parent=1 // pred_check
      _
    $region15: #{tpu_custom_call.1} parent=1 // pred_check_branch
      %44 = sbr.rel (0) target = $region17
    $region16: #{tpu_custom_call.1} parent=1 // pred_region
      %s46 = ssub.s32 256, 256
      %47 = vsyncadd [#allocation6], %s46
      %s48 = sshll.u32 [#allocation7], 4
      %s49 = int_to_ptr.vmem [resolvable:$true] %s48
      %54 = dma.hbm_to_vmem [thread:$0]  %s3, 256, %s49, [#allocation6], 64, 64, 4
    $region17: #{tpu_custom_call.1} parent=1 // pred_fallthru
      _
    // Predicated region
    $region18: #{tpu_custom_call.1} parent=1 // pred_check
      _
    $region19: #{tpu_custom_call.1} parent=1 // pred_check_branch
      %56 = sbr.rel (0) target = $region21
    $region20: #{tpu_custom_call.1} parent=1 // pred_region
      _
    $region21: #{tpu_custom_call.1} parent=1 // pred_fallthru
      _
    // Predicated region
    $region22: #{tpu_custom_call.1} parent=1 // pred_check
      _
    $region23: #{tpu_custom_call.1} parent=1 // pred_check_branch
      %58 = sbr.rel (0) target = $region25
    $region24: #{tpu_custom_call.1} parent=1 // pred_region
      _
    $region25: #{tpu_custom_call.1} parent=1 // pred_fallthru
      _
    // Predicated region
    $region26: #{tpu_custom_call.1} parent=1 // pred_check
      _
    $region27: #{tpu_custom_call.1} parent=1 // pred_check_branch
      %60 = sbr.rel (0) target = $region29
    $region28: #{tpu_custom_call.1} parent=1 // pred_region
      _
    $region29: #{tpu_custom_call.1} parent=1 // pred_fallthru
      _
    // Predicated region
    $region30: #{tpu_custom_call.1} parent=1 // pred_check
      _
    $region31: #{tpu_custom_call.1} parent=1 // pred_check_branch
      %62 = sbr.rel (0) target = $region33
    $region32: #{tpu_custom_call.1} parent=1 // pred_region
      _
    $region33: #{tpu_custom_call.1} parent=1 // pred_fallthru
      _
    // Predicated region
    $region34: #{tpu_custom_call.1} parent=1 // pred_check
      _
    $region35: #{tpu_custom_call.1} parent=1 // pred_check_branch
      %64 = sbr.rel (0) target = $region37
    $region36: #{tpu_custom_call.1} parent=1 // pred_region
      _
    $region37: #{tpu_custom_call.1} parent=1 // pred_fallthru
      _
    // Predicated region
    $region38: #{tpu_custom_call.1} parent=1 // pred_check
      _
    $region39: #{tpu_custom_call.1} parent=1 // pred_check_branch
      %66 = sbr.rel (0) target = $region41
    $region40: #{tpu_custom_call.1} parent=1 // pred_region
      %67 = dma.done [#allocation3], 256
    $region41: #{tpu_custom_call.1} parent=1 // pred_fallthru
      _
    // Predicated region
    $region42: #{tpu_custom_call.1} parent=1 // pred_check
      _
    $region43: #{tpu_custom_call.1} parent=1 // pred_check_branch
      %69 = sbr.rel (0) target = $region45
    $region44: #{tpu_custom_call.1} parent=1 // pred_region
      %70 = dma.done [#allocation6], 256
    $region45: #{tpu_custom_call.1} parent=1 // pred_fallthru
      _
    // Predicated region
    $region46: #{tpu_custom_call.1} parent=1 // pred_check
      _
    $region47: #{tpu_custom_call.1} parent=1 // pred_check_branch
      %72 = sbr.rel (0) target = $region49
    $region48: #{tpu_custom_call.1} parent=1 // pred_region
      %73 = dma.done [#allocation6], 256
    $region49: #{tpu_custom_call.1} parent=1 // pred_fallthru
      _
    %v75 = vld [vmem:[#allocation2] sm:$0xff]
    %v76 = vld [vmem:[#allocation2 + $0x8] sm:$0xff]
    %v77 = vld [vmem:[#allocation5] sm:$0xff]
    %v78 = vld [vmem:[#allocation5 + $0x8] sm:$0xff]
    %v79 = vld [vmem:[%s2] sm:$0x1]
    %v81 = vlaneseq
    %v82 = vshrl.u32 %v81, 7
    %v83 = vsub.s32 0, %v82
    %v84 = vrot.slane %v79, %v83
    %vm86 = vcmask 130048
    %v88 = vsel %vm86, %v75, 0
    %v91 = vsel %vm86, %v76, 0
    %93 = vmatprep.subr.mxu0 0.0
    %94 = vmatpush1.msra.mxu0 %v77
    %95 = vmatprep.subr.mxu0 0.0
    %96 = vmatpush1.msra.mxu0 %v78
    %97 = vmatprep.subr.mxu0 0.0
    %98 = vmatpush1.msra.mxu0 0.0
    %99 = vmatprep.subr.mxu0 0.0
    %100 = vmatpush1.msra.mxu0 0.0
    %101 = vmatprep.subr.mxu0 0.0
    %102 = vmatpush1.msra.mxu0 0.0
    %103 = vmatprep.subr.mxu0 0.0
    %104 = vmatpush1.msra.mxu0 0.0
    %105 = vmatprep.subr.mxu0 0.0
    %106 = vmatpush1.msra.mxu0 0.0
    %107 = vmatprep.subr.mxu0 0.0
    %108 = vmatpush1.msra.mxu0 0.0
    %109 = vmatprep.subr.mxu0 0.0
    %110 = vmatpush1.msra.mxu0 0.0
    %111 = vmatprep.subr.mxu0 0.0
    %112 = vmatpush1.msra.mxu0 0.0
    %113 = vmatprep.subr.mxu0 0.0
    %114 = vmatpush1.msra.mxu0 0.0
    %115 = vmatprep.subr.mxu0 0.0
    %116 = vmatpush1.msra.mxu0 0.0
    %117 = vmatprep.subr.mxu0 0.0
    %118 = vmatpush1.msra.mxu0 0.0
    %119 = vmatprep.subr.mxu0 0.0
    %120 = vmatpush1.msra.mxu0 0.0
    %121 = vmatprep.subr.mxu0 0.0
    %122 = vmatpush1.msra.mxu0 0.0
    %123 = vmatprep.subr.mxu0 0.0
    %124 = vmatpush1.msra.mxu0 0.0
    %125 = vmatprep.subr.mxu0 0.0
    %126 = vmatpush1.msra.mxu0 0.0
    %127 = vmatprep.subr.mxu0 0.0
    %128 = vmatpush1.msra.mxu0 0.0
    %129 = vmatprep.subr.mxu0 0.0
    %130 = vmatpush1.msra.mxu0 0.0
    %131 = vmatprep.subr.mxu0 0.0
    %132 = vmatpush1.msra.mxu0 0.0
    %133 = vmatprep.subr.mxu0 0.0
    %134 = vmatpush1.msra.mxu0 0.0
    %135 = vmatprep.subr.mxu0 0.0
    %136 = vmatpush1.msra.mxu0 0.0
    %137 = vmatprep.subr.mxu0 0.0
    %138 = vmatpush1.msra.mxu0 0.0
    %139 = vmatprep.subr.mxu0 0.0
    %140 = vmatpush1.msra.mxu0 0.0
    %141 = vmatprep.subr.mxu0 0.0
    %142 = vmatpush1.msra.mxu0 0.0
    %143 = vmatprep.subr.mxu0 0.0
    %144 = vmatpush1.msra.mxu0 0.0
    %145 = vmatprep.subr.mxu0 0.0
    %146 = vmatpush1.msra.mxu0 0.0
    %147 = vmatprep.subr.mxu0 0.0
    %148 = vmatpush1.msra.mxu0 0.0
    %149 = vmatprep.subr.mxu0 0.0
    %150 = vmatpush1.msra.mxu0 0.0
    %151 = vmatprep.subr.mxu0 0.0
    %152 = vmatpush1.msra.mxu0 0.0
    %153 = vmatprep.subr.mxu0 0.0
    %154 = vmatpush1.msra.mxu0 0.0
    %155 = vmatprep.subr.mxu0 0.0
    %156 = vmatpush1.msra.mxu0 0.0
    %157 = vmatprep.mubr.f32.mxu0 0.0
    %158 = vmatmul.mubr.f32.gmra.mrb[0].mxu0 %v88
    %v159 = vpop.f32.mrb[0].mxu0
    %v160 = vadd.f32 %v84, %v159
    %v161 = vpop.f32.mrb[0].mxu0
    %162 = vmatprep.mubr.f32.mxu0 0.0
    %163 = vmatmul.mubr.f32.gmra.mrb[0].mxu0 %v91
    %v164 = vpop.f32.mrb[0].mxu0
    %v165 = vadd.f32 %v84, %v164
    %v166 = vpop.f32.mrb[0].mxu0
    %167 = vdwg.mxu0
    %v168 = vmax.f32 %v160, 0.0
    %v169 = vmax.f32 %v165, 0.0
    %v170 = vpack.c.bf16 %v169, %v168
    %v171 = vld [vmem:[#allocation7] sm:$0xf]
    %v172 = vld [vmem:[#allocation7 + $0x4] sm:$0xf]
    %v173 = vld [vmem:[#allocation7 + $0x8] sm:$0xf]
    %v174 = vld [vmem:[#allocation7 + $0xc] sm:$0xf]
    %v175 = vld [vmem:[%s4] sm:$0x1]
    %v177 = vlaneseq
    %v178 = vshrl.u32 %v177, 7
    %v179 = vsub.s32 0, %v178
    %v180 = vrot.slane %v175, %v179
    %v186 = vunpack.c.l.b16 %v171
    %v187 = vunpack.c.l.b16 %v172
    %v188 = vunpack.c.l.b16 %v173
    %v189 = vunpack.c.l.b16 %v174
    %v190 = vpack.c.b16 %v187, %v186
    %v191 = vpack.c.b16 %v189, %v188
    %vm194 = vcmask 261120
    %v196 = vsel %vm194, %v170, 0
    %198 = vmatprep.subr.bf16.mxu0 0
    %199 = vmatpush1.bf16.msra.mxu0 %v190
    %200 = vmatprep.subr.bf16.mxu0 0
    %201 = vmatpush1.bf16.msra.mxu0 %v191
    %202 = vmatprep.subr.bf16.mxu0 0
    %203 = vmatpush1.bf16.msra.mxu0 0
    %204 = vmatprep.subr.bf16.mxu0 0
    %205 = vmatpush1.bf16.msra.mxu0 0
    %206 = vmatprep.subr.bf16.mxu0 0
    %207 = vmatpush1.bf16.msra.mxu0 0
    %208 = vmatprep.subr.bf16.mxu0 0
    %209 = vmatpush1.bf16.msra.mxu0 0
    %210 = vmatprep.subr.bf16.mxu0 0
    %211 = vmatpush1.bf16.msra.mxu0 0
    %212 = vmatprep.subr.bf16.mxu0 0
    %213 = vmatpush1.bf16.msra.mxu0 0
    %214 = vmatprep.subr.bf16.mxu0 0
    %215 = vmatpush1.bf16.msra.mxu0 0
    %216 = vmatprep.subr.bf16.mxu0 0
    %217 = vmatpush1.bf16.msra.mxu0 0
    %218 = vmatprep.subr.bf16.mxu0 0
    %219 = vmatpush1.bf16.msra.mxu0 0
    %220 = vmatprep.subr.bf16.mxu0 0
    %221 = vmatpush1.bf16.msra.mxu0 0
    %222 = vmatprep.subr.bf16.mxu0 0
    %223 = vmatpush1.bf16.msra.mxu0 0
    %224 = vmatprep.subr.bf16.mxu0 0
    %225 = vmatpush1.bf16.msra.mxu0 0
    %226 = vmatprep.subr.bf16.mxu0 0
    %227 = vmatpush1.bf16.msra.mxu0 0
    %228 = vmatprep.subr.bf16.mxu0 0
    %229 = vmatpush1.bf16.msra.mxu0 0
    %230 = vmatprep.mubr.bf16.mxu0 0
    %231 = vmatmul.mubr.bf16.gmra.mrb[0].mxu0 %v196
    %v232 = vpop.f32.mrb[0].mxu0
    %v233 = vadd.f32 %v180, %v232
    %v234 = vpop.f32.mrb[0].mxu0
    %v235 = vpop.f32.mrb[0].mxu0
    %v236 = vadd.f32 %v180, %v235
    %v237 = vpop.f32.mrb[0].mxu0
    %238 = vdwg.mxu0
    %v239 = vmax.f32 %v233, 0.0
    %v240 = vmax.f32 %v236, 0.0
    %v241 = vpack.c.bf16 %v240, %v239
    %v242 = vld [vmem:[%s5] sm:$0xf]
    %v243 = vld [vmem:[%s5 + $0x4] sm:$0xf]
    %v244 = vld [vmem:[%s5 + $0x8] sm:$0xf]
    %v245 = vld [vmem:[%s5 + $0xc] sm:$0xf]
    %v246 = vld [vmem:[%s6] sm:$0x1]
    %v248 = vlaneseq
    %v249 = vshrl.u32 %v248, 7
    %v250 = vsub.s32 0, %v249
    %v251 = vrot.slane %v246, %v250
    %v257 = vunpack.c.l.b16 %v242
    %v258 = vunpack.c.l.b16 %v243
    %v259 = vunpack.c.l.b16 %v244
    %v260 = vunpack.c.l.b16 %v245
    %v261 = vpack.c.b16 %v258, %v257
    %v262 = vpack.c.b16 %v260, %v259
    %v266 = vsel %vm194, %v241, 0
    %268 = vmatprep.subr.bf16.mxu0 0
    %269 = vmatpush1.bf16.msra.mxu0 %v261
    %270 = vmatprep.subr.bf16.mxu0 0
    %271 = vmatpush1.bf16.msra.mxu0 %v262
    %272 = vmatprep.subr.bf16.mxu0 0
    %273 = vmatpush1.bf16.msra.mxu0 0
    %274 = vmatprep.subr.bf16.mxu0 0
    %275 = vmatpush1.bf16.msra.mxu0 0
    %276 = vmatprep.subr.bf16.mxu0 0
    %277 = vmatpush1.bf16.msra.mxu0 0
    %278 = vmatprep.subr.bf16.mxu0 0
    %279 = vmatpush1.bf16.msra.mxu0 0
    %280 = vmatprep.subr.bf16.mxu0 0
    %281 = vmatpush1.bf16.msra.mxu0 0
    %282 = vmatprep.subr.bf16.mxu0 0
    %283 = vmatpush1.bf16.msra.mxu0 0
    %284 = vmatprep.subr.bf16.mxu0 0
    %285 = vmatpush1.bf16.msra.mxu0 0
    %286 = vmatprep.subr.bf16.mxu0 0
    %287 = vmatpush1.bf16.msra.mxu0 0
    %288 = vmatprep.subr.bf16.mxu0 0
    %289 = vmatpush1.bf16.msra.mxu0 0
    %290 = vmatprep.subr.bf16.mxu0 0
    %291 = vmatpush1.bf16.msra.mxu0 0
    %292 = vmatprep.subr.bf16.mxu0 0
    %293 = vmatpush1.bf16.msra.mxu0 0
    %294 = vmatprep.subr.bf16.mxu0 0
    %295 = vmatpush1.bf16.msra.mxu0 0
    %296 = vmatprep.subr.bf16.mxu0 0
    %297 = vmatpush1.bf16.msra.mxu0 0
    %298 = vmatprep.subr.bf16.mxu0 0
    %299 = vmatpush1.bf16.msra.mxu0 0
    %300 = vmatprep.mubr.bf16.mxu0 0
    %301 = vmatmul.mubr.bf16.gmra.mrb[0].mxu0 %v266
    %v302 = vpop.f32.mrb[0].mxu0
    %v303 = vadd.f32 %v251, %v302
    %v304 = vpop.f32.mrb[0].mxu0
    %v305 = vpop.f32.mrb[0].mxu0
    %v306 = vadd.f32 %v251, %v305
    %v307 = vpop.f32.mrb[0].mxu0
    %308 = vdwg.mxu0
    %v309 = vld [vmem:[%s7] sm:$0x1]
    %v311 = vlaneseq
    %v312 = vshrl.u32 %v311, 7
    %v313 = vsub.s32 0, %v312
    %v314 = vrot.slane %v309, %v313
    %v316 = vmax.f32 %v303, %v314
    %v317 = vmax.f32 %v306, %v314
    %v318 = vld [vmem:[%s8] sm:$0x1]
    %v320 = vlaneseq
    %v321 = vshrl.u32 %v320, 7
    %v322 = vsub.s32 0, %v321
    %v323 = vrot.slane %v318, %v322
    %v325 = vmin.f32 %v316, %v323
    %v326 = vmin.f32 %v317, %v323
    %327 = vst [vmem:[#allocation8] sm:$0xff] %v325
    %328 = vst [vmem:[#allocation8 + $0x8] sm:$0xff] %v326
    // Predicated region
    $region50: #{tpu_custom_call.1} parent=1 // pred_check
      _
    $region51: #{tpu_custom_call.1} parent=1 // pred_check_branch
      %330 = sbr.rel (0) target = $region53
    $region52: #{tpu_custom_call.1} parent=1 // pred_region
      %s332 = ssub.s32 256, 128
      %333 = vsyncadd [#allocation4], %s332
      %s334 = sshll.u32 [#allocation8], 4
      %s335 = int_to_ptr.vmem [resolvable:$true] %s334
      %340 = dma.vmem_to_hbm [thread:$0]  %s335, 128, %s9, [#allocation4], 128, 128, 8
    $region53: #{tpu_custom_call.1} parent=1 // pred_fallthru
      _
    // Predicated region
    $region54: #{tpu_custom_call.1} parent=1 // pred_check
      _
    $region55: #{tpu_custom_call.1} parent=1 // pred_check_branch
      %342 = sbr.rel (0) target = $region57
    $region56: #{tpu_custom_call.1} parent=1 // pred_region
      %343 = dma.done [#allocation4], 256
    $region57: #{tpu_custom_call.1} parent=1 // pred_fallthru
      _
    %344 = vsyncpa [#allocation3], 1
    %345 = vsyncpa [#allocation6], 1
    %346 = vsyncpa [#allocation4], 1

</llo_original>
